<compile_context>
chip_gen: v5e
topology: v5e:2x2
jax: 0.10.0
libtpu: 0.0.40
codegen_flags: <defaults>
</compile_context>

<pallas_src>
import numpy as np
import jax
import jax.numpy as jnp
from jax.experimental import pallas as pl
from jax.experimental.pallas import tpu as pltpu


# ----------------------------------------------------------------------------- consts
def _pool_upsample_constants(Wm: int):
    """One-hot pair-sum / pair-diff compaction and 2x nearest upsample matrices."""
    W2, Ws = 2 * Wm, Wm // 2
    i = np.arange(W2)[:, None]            # contraction (input lane) index
    j = np.arange(W2)[None, :]            # output lane index
    left, right = j < Wm, j >= Wm
    jl, jr = j, j - Wm
    f = np.float32
    even_l = ((i == 2 * jl) & left).astype(f)
    odd_l = ((i == 2 * jl + 1) & left).astype(f)
    even_r = ((i == 2 * jr) & right).astype(f)
    odd_r = ((i == 2 * jr + 1) & right).astype(f)
    sum_l, sum_r = even_l + odd_l, even_r + odd_r      # pair-sum -> left / right half
    dif_l, dif_r = even_l - odd_l, even_r - odd_r      # pair-diff -> left / right half
    cmat = np.stack([sum_l, sum_r, dif_l, dif_r])

    iu = np.arange(Ws)[:, None]
    ju = np.arange(W2)[None, :]
    jm = np.where(ju < Wm, ju, ju - Wm)                # lane position within each half
    up = ((jm == 2 * iu) | (jm == 2 * iu + 1)).astype(f)

    # Entries are 0 / +-1 -> exactly representable in bf16.
    return jnp.asarray(cmat, dtype=jnp.bfloat16), jnp.asarray(up, dtype=jnp.bfloat16)


# ----------------------------------------------------------------------------- kernel
def _make_tfe_kernel(Wm: int, out_dtype):
    W2 = 2 * Wm
    f32, bf16 = jnp.float32, jnp.bfloat16

    def split_dot(x, m):
        # f32-accurate matmul on the bf16 MXU without relying on `precision=`:
        # x = hi + lo with both parts bf16-representable; accumulate in f32.
        hi = x.astype(bf16)
        lo = (x - hi.astype(f32)).astype(bf16)
        return (jnp.dot(hi, m, preferred_element_type=f32)
                + jnp.dot(lo, m, preferred_element_type=f32))

    def kernel(cmat_ref, up_ref, xl_ref, xm_ref, xs_ref, o_ref):
        sum_l, sum_r = cmat_ref[0], cmat_ref[1]
        dif_l, dif_r = cmat_ref[2], cmat_ref[3]

        # ---- slab 0: 2x2 max-pool + 2x2 avg-pool of the large-scale map ----------
        # xl row layout: [x_l row 4q | 4q+1 | 4q+2 | 4q+3], each 2*Wm lanes.
        q0 = xl_ref[0, :, 0 * W2:1 * W2]
        q1 = xl_ref[0, :, 1 * W2:2 * W2]
        q2 = xl_ref[0, :, 2 * W2:3 * W2]
        q3 = xl_ref[0, :, 3 * W2:4 * W2]
        hmax_a = jnp.maximum(q0, q1).astype(f32)        # vertical max (exact in any dtype)
        hmax_b = jnp.maximum(q2, q3).astype(f32)
        hsum_a = q0.astype(f32) + q1.astype(f32)        # vertical sum in f32
        hsum_b = q2.astype(f32) + q3.astype(f32)
        # max(u, v) = 0.5*(u + v) + 0.5*|u - v|:  fold 0.5*pair-sum(max) and the
        # 0.25*pair-sum(avg) into ONE compaction dot per half, and |u - v| into one
        # pair-diff compaction per half -> 4 logical dots, no lane gathers / rolls.
        g_a = 0.5 * hmax_a + 0.25 * hsum_a
        g_b = 0.5 * hmax_b + 0.25 * hsum_b
        smooth = split_dot(g_a, sum_l) + split_dot(g_b, sum_r)
        diff = split_dot(hmax_a, dif_l) + split_dot(hmax_b, dif_r)
        o_ref[0, 0] = (smooth + 0.5 * jnp.abs(diff)).astype(out_dtype)

        # ---- slab 1: mid-scale map passes through unchanged -----------------------
        o_ref[0, 1] = xm_ref[0]

        # ---- slab 2: nearest 2x upsample of the small-scale map (one-hot expand) --
        o_ref[0, 2] = split_dot(xs_ref[0].astype(f32), up_ref[...]).astype(out_dtype)

    return kernel


# ----------------------------------------------------------------------------- tiling
def _vmem_limit_bytes() -> int:
    try:
        phys = int(pltpu.get_tpu_info().vmem_capacity_bytes)
    except Exception:
        phys = 64 * 1024 * 1024
    # 64 MiB on v5e/v6e (128 MiB physical), 32 MiB on v7x (64 MiB per TensorCore).
    return int(max(32 * 1024 * 1024, min(64 * 1024 * 1024, phys // 2)))


def _pick_row_tile(n_rows: int, bytes_per_row: int, budget_bytes: int, align: int) -> int:
    """Largest `align`-multiple row tile whose working set fits the budget.

    Prefers a divisor of n_rows; otherwise returns an aligned tile and the grid uses
    cdiv with a ragged (masked) final block — never the full array past the budget."""
    if n_rows * bytes_per_row <= budget_bytes:
        return n_rows
    cap = max(align, int(budget_bytes // max(bytes_per_row, 1)) // align * align)
    cap = min(cap, n_rows)
    best_div = 0
    for cand in range(align, cap + 1, align):
        if n_rows % cand == 0:
            best_div = cand
    return best_div if best_div else cap


# ----------------------------------------------------------------------------- wrapper
def tfe_pallas(x_l, x_m, x_s, *, _force_row_tile=None):
    """Fused TFE forward (standard 2x / 0.5x FPN ratios). Returns (B, 3*C, Hm, Wm)."""
    B, C, Hm, Wm = x_m.shape
    if Hm % 2 or Wm % 2:
        raise ValueError("mid-scale spatial dims must be even")
    if x_l.shape != (B, C, 2 * Hm, 2 * Wm) or x_s.shape != (B, C, Hm // 2, Wm // 2):
        raise ValueError("TFE kernel expects the standard 2x / 0.5x FPN scale ratios")
    # TODO(synk): general (non-integer) adaptive-pool bins / arbitrary nearest resize
    # are not covered; only the standard 2x / 0.5x FPN ratios are supported.

    W2, W8, Ws = 2 * Wm, 8 * Wm, Wm // 2
    Rq = C * (Hm // 2)                     # merged rows per image (same for all slabs)
    dtype = x_m.dtype
    itemsize = jnp.dtype(dtype).itemsize

    # Free (row-major) reshapes: fold 4 / 2 / 1 spatial rows of x_l / x_m / x_s into
    # ONE lane-dense row per output row-pair, so every branch is purely lane-wise.
    xl_r = x_l.reshape(B, Rq, W8)          # [row 4q | 4q+1 | 4q+2 | 4q+3]
    xm_r = x_m.reshape(B, Rq, W2)          # [row 2q | 2q+1]
    xs_r = x_s.reshape(B, Rq, Ws)          # [row q]

    cmat, up_mat = _pool_upsample_constants(Wm)

    # Row tile sized against the REAL footprint: double-buffered blocks + f32
    # temporaries + resident constants, within the per-generation VMEM limit.
    vmem_limit = _vmem_limit_bytes()
    const_bytes = 2 * (cmat.size + up_mat.size) * 2            # bf16, double-buffered
    block_bytes_per_row = (W8 + W2 + Ws + 3 * W2) * itemsize   # all four row-blocks
    temp_bytes_per_row = 16 * W2 * 4                           # generous f32 temporaries
    bytes_per_row = 2 * block_bytes_per_row + temp_bytes_per_row
    budget = int(0.6 * vmem_limit) - const_bytes
    row_align = 8 * max(1, 4 // itemsize)                      # 8 (f32) / 16 (bf16) / 32
    Rt = _force_row_tile or _pick_row_tile(
        Rq, bytes_per_row, max(budget, row_align * bytes_per_row), row_align)
    grid = (B, pl.cdiv(Rq, Rt))

    flops = 2 * B * Rq * (8 * W2 * W2 + 2 * Ws * W2) + 20 * B * Rq * W2
    bytes_accessed = ((x_l.size + x_m.size + x_s.size + B * 3 * Rq * W2) * itemsize
                      + (cmat.size + up_mat.size) * 2)

    out = pl.pallas_call(
        _make_tfe_kernel(Wm, dtype),
        out_shape=jax.ShapeDtypeStruct((B, 3, Rq, W2), dtype),
        grid=grid,
        in_specs=[
            pl.BlockSpec((4, W2, W2), lambda b, r: (0, 0, 0)),   # constants: resident,
            pl.BlockSpec((Ws, W2), lambda b, r: (0, 0)),         # DMA'd once
            pl.BlockSpec((1, Rt, W8), lambda b, r: (b, r, 0)),
            pl.BlockSpec((1, Rt, W2), lambda b, r: (b, r, 0)),
            pl.BlockSpec((1, Rt, Ws), lambda b, r: (b, r, 0)),
        ],
        out_specs=pl.BlockSpec((1, 3, Rt, W2), lambda b, r: (b, 0, r, 0)),
        compiler_params=pltpu.CompilerParams(
            dimension_semantics=("parallel", "parallel"),
            vmem_limit_bytes=vmem_limit,
        ),
        cost_estimate=pl.CostEstimate(
            flops=int(flops), transcendentals=0, bytes_accessed=int(bytes_accessed)),
    )(cmat, up_mat, xl_r, xm_r, xs_r)

    # Free reshape back to the NCHW layout torch.cat(dim=1) produces.
    return out.reshape(B, 3 * C, Hm, Wm)


# ----------------------------------------------------------------------------- reference
def tfe_ref(x_l, x_m, x_s):
    """Pure-JAX reference mirroring the PyTorch forward (2x FPN ratios)."""
    B, C, Hm, Wm = x_m.shape
    xl6 = x_l.reshape(B, C, Hm, 2, Wm, 2)
    pooled = jnp.max(xl6, axis=(3, 5)) + jnp.mean(xl6, axis=(3, 5))
    up = jnp.repeat(jnp.repeat(x_s, 2, axis=2), 2, axis=3)
    return jnp.concatenate([pooled, x_m, up], axis=1)


if __name__ == "__main__":
    B, C, Hm, Wm = 2, 4, 16, 16
    key = jax.random.PRNGKey(0)
    kl, km, ks = jax.random.split(key, 3)
    x_l = jax.random.normal(kl, (B, C, 2 * Hm, 2 * Wm), dtype=jnp.float32)
    x_m = jax.random.normal(km, (B, C, Hm, Wm), dtype=jnp.float32)
    x_s = jax.random.normal(ks, (B, C, Hm // 2, Wm // 2), dtype=jnp.float32)

    ref = tfe_ref(x_l, x_m, x_s)

    # Default tiling (single row tile per batch at this size).
    out = jax.block_until_ready(tfe_pallas(x_l, x_m, x_s))
    assert out.shape == (B, 3 * C, Hm, Wm)
    err = float(jnp.max(jnp.abs(out - ref)))
    assert jnp.allclose(out, ref, atol=2e-4, rtol=2e-4), f"mismatch (default), max abs err={err}"

    # Also exercise the multi-row-tile path (grid = (B, 4)) to smoke-test tiling.
    out_t = jax.block_until_ready(tfe_pallas(x_l, x_m, x_s, _force_row_tile=8))
    err_t = float(jnp.max(jnp.abs(out_t - ref)))
    assert jnp.allclose(out_t, ref, atol=2e-4, rtol=2e-4), f"mismatch (tiled), max abs err={err_t}"

    print("KERNEL_OK")
</pallas_src>

<mosaic_0001>
module attributes {stable_mosaic.version = 11 : i64} {
  func.func @kernel(%arg0: i32, %arg1: i32, %arg2: memref<4x32x32xbf16, #tpu.memory_space<vmem>>, %arg3: memref<8x32xbf16, #tpu.memory_space<vmem>>, %arg4: memref<1x32x128xf32, #tpu.memory_space<vmem>>, %arg5: memref<1x32x32xf32, #tpu.memory_space<vmem>>, %arg6: memref<1x32x8xf32, #tpu.memory_space<vmem>>, %arg7: memref<1x3x32x32xf32, #tpu.memory_space<vmem>>) attributes {dimension_semantics = [#tpu.dimension_semantics<parallel>, #tpu.dimension_semantics<parallel>], iteration_bounds = array<i64: 2, 1>, scalar_prefetch = 0 : i64, scratch_operands = 0 : i64, tpu.core_type = #tpu.core_type<tc>, window_params = [{pipeline_mode = #tpu.pipeline_mode<synchronous>, transform_indices = @transform_0, window_bounds = array<i64: 4, 32, 32>}, {pipeline_mode = #tpu.pipeline_mode<synchronous>, transform_indices = @transform_1, window_bounds = array<i64: 8, 32>}, {transform_indices = @transform_2, window_bounds = array<i64: 1, 32, 128>}, {transform_indices = @transform_3, window_bounds = array<i64: 1, 32, 32>}, {transform_indices = @transform_4, window_bounds = array<i64: 1, 32, 8>}, {transform_indices = @transform_5, window_bounds = array<i64: 1, 3, 32, 32>}]} {
    %c0 = arith.constant 0 : index
    %c0_0 = arith.constant 0 : index
    %c0_1 = arith.constant 0 : index
    %0 = vector.load %arg2[%c0, %c0_0, %c0_1] : memref<4x32x32xbf16, #tpu.memory_space<vmem>>, vector<1x32x32xbf16>
    %1 = vector.shape_cast %0 : vector<1x32x32xbf16> to vector<32x32xbf16>
    %c1 = arith.constant 1 : index
    %c0_2 = arith.constant 0 : index
    %c0_3 = arith.constant 0 : index
    %2 = vector.load %arg2[%c1, %c0_2, %c0_3] : memref<4x32x32xbf16, #tpu.memory_space<vmem>>, vector<1x32x32xbf16>
    %3 = vector.shape_cast %2 : vector<1x32x32xbf16> to vector<32x32xbf16>
    %c2 = arith.constant 2 : index
    %c0_4 = arith.constant 0 : index
    %c0_5 = arith.constant 0 : index
    %4 = vector.load %arg2[%c2, %c0_4, %c0_5] : memref<4x32x32xbf16, #tpu.memory_space<vmem>>, vector<1x32x32xbf16>
    %5 = vector.shape_cast %4 : vector<1x32x32xbf16> to vector<32x32xbf16>
    %c3 = arith.constant 3 : index
    %c0_6 = arith.constant 0 : index
    %c0_7 = arith.constant 0 : index
    %6 = vector.load %arg2[%c3, %c0_6, %c0_7] : memref<4x32x32xbf16, #tpu.memory_space<vmem>>, vector<1x32x32xbf16>
    %7 = vector.shape_cast %6 : vector<1x32x32xbf16> to vector<32x32xbf16>
    %c0_8 = arith.constant 0 : index
    %c0_9 = arith.constant 0 : index
    %c0_10 = arith.constant 0 : index
    %8 = vector.load %arg4[%c0_8, %c0_9, %c0_10] : memref<1x32x128xf32, #tpu.memory_space<vmem>>, vector<1x32x32xf32>
    %9 = vector.shape_cast %8 : vector<1x32x32xf32> to vector<32x32xf32>
    %c0_11 = arith.constant 0 : index
    %c0_12 = arith.constant 0 : index
    %c32 = arith.constant 32 : index
    %10 = vector.load %arg4[%c0_11, %c0_12, %c32] : memref<1x32x128xf32, #tpu.memory_space<vmem>>, vector<1x32x32xf32>
    %11 = vector.shape_cast %10 : vector<1x32x32xf32> to vector<32x32xf32>
    %c0_13 = arith.constant 0 : index
    %c0_14 = arith.constant 0 : index
    %c64 = arith.constant 64 : index
    %12 = vector.load %arg4[%c0_13, %c0_14, %c64] : memref<1x32x128xf32, #tpu.memory_space<vmem>>, vector<1x32x32xf32>
    %13 = vector.shape_cast %12 : vector<1x32x32xf32> to vector<32x32xf32>
    %c0_15 = arith.constant 0 : index
    %c0_16 = arith.constant 0 : index
    %c96 = arith.constant 96 : index
    %14 = vector.load %arg4[%c0_15, %c0_16, %c96] : memref<1x32x128xf32, #tpu.memory_space<vmem>>, vector<1x32x32xf32>
    %15 = vector.shape_cast %14 : vector<1x32x32xf32> to vector<32x32xf32>
    %16 = arith.maximumf %9, %11 : vector<32x32xf32>
    %17 = arith.maximumf %13, %15 : vector<32x32xf32>
    %18 = arith.addf %9, %11 : vector<32x32xf32>
    %19 = arith.addf %13, %15 : vector<32x32xf32>
    %cst = arith.constant 5.000000e-01 : f32
    %20 = vector.broadcast %cst : f32 to vector<32x32xf32>
    %21 = arith.mulf %20, %16 : vector<32x32xf32>
    %cst_17 = arith.constant 2.500000e-01 : f32
    %22 = vector.broadcast %cst_17 : f32 to vector<32x32xf32>
    %23 = arith.mulf %22, %18 : vector<32x32xf32>
    %24 = arith.addf %21, %23 : vector<32x32xf32>
    %cst_18 = arith.constant 5.000000e-01 : f32
    %25 = vector.broadcast %cst_18 : f32 to vector<32x32xf32>
    %26 = arith.mulf %25, %17 : vector<32x32xf32>
    %cst_19 = arith.constant 2.500000e-01 : f32
    %27 = vector.broadcast %cst_19 : f32 to vector<32x32xf32>
    %28 = arith.mulf %27, %19 : vector<32x32xf32>
    %29 = arith.addf %26, %28 : vector<32x32xf32>
    %30 = arith.truncf %24 : vector<32x32xf32> to vector<32x32xbf16>
    %31 = arith.extf %30 : vector<32x32xbf16> to vector<32x32xf32>
    %32 = arith.subf %24, %31 : vector<32x32xf32>
    %33 = arith.truncf %32 : vector<32x32xf32> to vector<32x32xbf16>
    %cst_20 = arith.constant dense<0.000000e+00> : vector<32x32xf32>
    %34 = tpu.matmul %30, %1, %cst_20 {dimension_numbers = #tpu.dot_dimension_numbers<[1], [0], [0], [1], [0, 0, 1, 1], [], []>} : vector<32x32xbf16>, vector<32x32xbf16>, vector<32x32xf32> -> vector<32x32xf32>
    %cst_21 = arith.constant dense<0.000000e+00> : vector<32x32xf32>
    %35 = tpu.matmul %33, %1, %cst_21 {dimension_numbers = #tpu.dot_dimension_numbers<[1], [0], [0], [1], [0, 0, 1, 1], [], []>} : vector<32x32xbf16>, vector<32x32xbf16>, vector<32x32xf32> -> vector<32x32xf32>
    %36 = arith.addf %34, %35 : vector<32x32xf32>
    %37 = arith.truncf %29 : vector<32x32xf32> to vector<32x32xbf16>
    %38 = arith.extf %37 : vector<32x32xbf16> to vector<32x32xf32>
    %39 = arith.subf %29, %38 : vector<32x32xf32>
    %40 = arith.truncf %39 : vector<32x32xf32> to vector<32x32xbf16>
    %cst_22 = arith.constant dense<0.000000e+00> : vector<32x32xf32>
    %41 = tpu.matmul %37, %3, %cst_22 {dimension_numbers = #tpu.dot_dimension_numbers<[1], [0], [0], [1], [0, 0, 1, 1], [], []>} : vector<32x32xbf16>, vector<32x32xbf16>, vector<32x32xf32> -> vector<32x32xf32>
    %cst_23 = arith.constant dense<0.000000e+00> : vector<32x32xf32>
    %42 = tpu.matmul %40, %3, %cst_23 {dimension_numbers = #tpu.dot_dimension_numbers<[1], [0], [0], [1], [0, 0, 1, 1], [], []>} : vector<32x32xbf16>, vector<32x32xbf16>, vector<32x32xf32> -> vector<32x32xf32>
    %43 = arith.addf %41, %42 : vector<32x32xf32>
    %44 = arith.addf %36, %43 : vector<32x32xf32>
    %45 = arith.truncf %16 : vector<32x32xf32> to vector<32x32xbf16>
    %46 = arith.extf %45 : vector<32x32xbf16> to vector<32x32xf32>
    %47 = arith.subf %16, %46 : vector<32x32xf32>
    %48 = arith.truncf %47 : vector<32x32xf32> to vector<32x32xbf16>
    %cst_24 = arith.constant dense<0.000000e+00> : vector<32x32xf32>
    %49 = tpu.matmul %45, %5, %cst_24 {dimension_numbers = #tpu.dot_dimension_numbers<[1], [0], [0], [1], [0, 0, 1, 1], [], []>} : vector<32x32xbf16>, vector<32x32xbf16>, vector<32x32xf32> -> vector<32x32xf32>
    %cst_25 = arith.constant dense<0.000000e+00> : vector<32x32xf32>
    %50 = tpu.matmul %48, %5, %cst_25 {dimension_numbers = #tpu.dot_dimension_numbers<[1], [0], [0], [1], [0, 0, 1, 1], [], []>} : vector<32x32xbf16>, vector<32x32xbf16>, vector<32x32xf32> -> vector<32x32xf32>
    %51 = arith.addf %49, %50 : vector<32x32xf32>
    %52 = arith.truncf %17 : vector<32x32xf32> to vector<32x32xbf16>
    %53 = arith.extf %52 : vector<32x32xbf16> to vector<32x32xf32>
    %54 = arith.subf %17, %53 : vector<32x32xf32>
    %55 = arith.truncf %54 : vector<32x32xf32> to vector<32x32xbf16>
    %cst_26 = arith.constant dense<0.000000e+00> : vector<32x32xf32>
    %56 = tpu.matmul %52, %7, %cst_26 {dimension_numbers = #tpu.dot_dimension_numbers<[1], [0], [0], [1], [0, 0, 1, 1], [], []>} : vector<32x32xbf16>, vector<32x32xbf16>, vector<32x32xf32> -> vector<32x32xf32>
    %cst_27 = arith.constant dense<0.000000e+00> : vector<32x32xf32>
    %57 = tpu.matmul %55, %7, %cst_27 {dimension_numbers = #tpu.dot_dimension_numbers<[1], [0], [0], [1], [0, 0, 1, 1], [], []>} : vector<32x32xbf16>, vector<32x32xbf16>, vector<32x32xf32> -> vector<32x32xf32>
    %58 = arith.addf %56, %57 : vector<32x32xf32>
    %59 = arith.addf %51, %58 : vector<32x32xf32>
    %60 = math.absf %59 : vector<32x32xf32>
    %cst_28 = arith.constant 5.000000e-01 : f32
    %61 = vector.broadcast %cst_28 : f32 to vector<32x32xf32>
    %62 = arith.mulf %61, %60 : vector<32x32xf32>
    %63 = arith.addf %44, %62 : vector<32x32xf32>
    %c0_29 = arith.constant 0 : index
    %c0_30 = arith.constant 0 : index
    %c0_31 = arith.constant 0 : index
    %c0_32 = arith.constant 0 : index
    %64 = vector.load %arg7[%c0_29, %c0_30, %c0_31, %c0_32] : memref<1x3x32x32xf32, #tpu.memory_space<vmem>>, vector<1x1x32x32xf32>
    %65 = vector.shape_cast %64 : vector<1x1x32x32xf32> to vector<32x32xf32>
    %66 = vector.shape_cast %63 : vector<32x32xf32> to vector<1x1x32x32xf32>
    tpu.vector_store %arg7[%c0_29, %c0_30, %c0_31, %c0_32], %66 {strides = array<i32>} : memref<1x3x32x32xf32, #tpu.memory_space<vmem>>, vector<1x1x32x32xf32>,
    %c0_33 = arith.constant 0 : index
    %c0_34 = arith.constant 0 : index
    %c0_35 = arith.constant 0 : index
    %67 = vector.load %arg5[%c0_33, %c0_34, %c0_35] : memref<1x32x32xf32, #tpu.memory_space<vmem>>, vector<1x32x32xf32>
    %68 = vector.shape_cast %67 : vector<1x32x32xf32> to vector<32x32xf32>
    %c0_36 = arith.constant 0 : index
    %c1_37 = arith.constant 1 : index
    %c0_38 = arith.constant 0 : index
    %c0_39 = arith.constant 0 : index
    %69 = vector.load %arg7[%c0_36, %c1_37, %c0_38, %c0_39] : memref<1x3x32x32xf32, #tpu.memory_space<vmem>>, vector<1x1x32x32xf32>
    %70 = vector.shape_cast %69 : vector<1x1x32x32xf32> to vector<32x32xf32>
    %71 = vector.shape_cast %68 : vector<32x32xf32> to vector<1x1x32x32xf32>
    tpu.vector_store %arg7[%c0_36, %c1_37, %c0_38, %c0_39], %71 {strides = array<i32>} : memref<1x3x32x32xf32, #tpu.memory_space<vmem>>, vector<1x1x32x32xf32>,
    %c0_40 = arith.constant 0 : index
    %c0_41 = arith.constant 0 : index
    %c0_42 = arith.constant 0 : index
    %72 = vector.load %arg6[%c0_40, %c0_41, %c0_42] : memref<1x32x8xf32, #tpu.memory_space<vmem>>, vector<1x32x8xf32>
    %73 = vector.shape_cast %72 : vector<1x32x8xf32> to vector<32x8xf32>
    %c0_43 = arith.constant 0 : index
    %c0_44 = arith.constant 0 : index
    %74 = vector.load %arg3[%c0_43, %c0_44] : memref<8x32xbf16, #tpu.memory_space<vmem>>, vector<8x32xbf16>
    %75 = arith.truncf %73 : vector<32x8xf32> to vector<32x8xbf16>
    %76 = arith.extf %75 : vector<32x8xbf16> to vector<32x8xf32>
    %77 = arith.subf %73, %76 : vector<32x8xf32>
    %78 = arith.truncf %77 : vector<32x8xf32> to vector<32x8xbf16>
    %cst_45 = arith.constant dense<0.000000e+00> : vector<32x32xf32>
    %79 = tpu.matmul %75, %74, %cst_45 {dimension_numbers = #tpu.dot_dimension_numbers<[1], [0], [0], [1], [0, 0, 1, 1], [], []>} : vector<32x8xbf16>, vector<8x32xbf16>, vector<32x32xf32> -> vector<32x32xf32>
    %cst_46 = arith.constant dense<0.000000e+00> : vector<32x32xf32>
    %80 = tpu.matmul %78, %74, %cst_46 {dimension_numbers = #tpu.dot_dimension_numbers<[1], [0], [0], [1], [0, 0, 1, 1], [], []>} : vector<32x8xbf16>, vector<8x32xbf16>, vector<32x32xf32> -> vector<32x32xf32>
    %81 = arith.addf %79, %80 : vector<32x32xf32>
    %c0_47 = arith.constant 0 : index
    %c2_48 = arith.constant 2 : index
    %c0_49 = arith.constant 0 : index
    %c0_50 = arith.constant 0 : index
    %82 = vector.load %arg7[%c0_47, %c2_48, %c0_49, %c0_50] : memref<1x3x32x32xf32, #tpu.memory_space<vmem>>, vector<1x1x32x32xf32>
    %83 = vector.shape_cast %82 : vector<1x1x32x32xf32> to vector<32x32xf32>
    %84 = vector.shape_cast %81 : vector<32x32xf32> to vector<1x1x32x32xf32>
    tpu.vector_store %arg7[%c0_47, %c2_48, %c0_49, %c0_50], %84 {strides = array<i32>} : memref<1x3x32x32xf32, #tpu.memory_space<vmem>>, vector<1x1x32x32xf32>,
    return
  }
  func.func @transform_0(%arg0: i32, %arg1: i32) -> (i32, i32, i32) {
    %c0_i32 = arith.constant 0 : i32
    %c0_i32_0 = arith.constant 0 : i32
    %c0_i32_1 = arith.constant 0 : i32
    %c0_i32_2 = arith.constant 0 : i32
    return %c0_i32, %c0_i32_0, %c0_i32_1 : i32, i32, i32
  }
  func.func @transform_1(%arg0: i32, %arg1: i32) -> (i32, i32) {
    %c0_i32 = arith.constant 0 : i32
    %c0_i32_0 = arith.constant 0 : i32
    %c0_i32_1 = arith.constant 0 : i32
    return %c0_i32, %c0_i32_0 : i32, i32
  }
  func.func @transform_2(%arg0: i32, %arg1: i32) -> (i32, i32, i32) {
    %c0_i32 = arith.constant 0 : i32
    %c0_i32_0 = arith.constant 0 : i32
    return %arg0, %arg1, %c0_i32 : i32, i32, i32
  }
  func.func @transform_3(%arg0: i32, %arg1: i32) -> (i32, i32, i32) {
    %c0_i32 = arith.constant 0 : i32
    %c0_i32_0 = arith.constant 0 : i32
    return %arg0, %arg1, %c0_i32 : i32, i32, i32
  }
  func.func @transform_4(%arg0: i32, %arg1: i32) -> (i32, i32, i32) {
    %c0_i32 = arith.constant 0 : i32
    %c0_i32_0 = arith.constant 0 : i32
    return %arg0, %arg1, %c0_i32 : i32, i32, i32
  }
  func.func @transform_5(%arg0: i32, %arg1: i32) -> (i32, i32, i32, i32) {
    %c0_i32 = arith.constant 0 : i32
    %c0_i32_0 = arith.constant 0 : i32
    %c0_i32_1 = arith.constant 0 : i32
    return %arg0, %c0_i32, %arg1, %c0_i32_0 : i32, i32, i32, i32
  }
}

</mosaic_0001>

<llo_original>
// kernel: tpu_custom_call.1
$region0: #{tpu_custom_call.1}
  #allocation0 [shape = 'u32[]', space=smem, size = 0x4, offset = 0x4, fixed_abs, tag = 'smem constant byte address 0x4 - core index']
  #allocation1 [shape = 'u32[72,128]{1,0:T(1,128)}', space=vmem, size = 0x9000, scoped, tag = 'internal scratch']
  %s0 = inlined_call_operand.vmem [shape: bf16[4,32,32], index: 0, kind: input, shape index: {}]
  %s1 = inlined_call_operand.vmem [shape: bf16[8,32], index: 1, kind: input, shape index: {}]
  %s2 = inlined_call_operand.hbm [shape: f32[2,32,128], index: 2, kind: input, shape index: {}]
  %s3 = inlined_call_operand.hbm [shape: f32[2,32,32], index: 3, kind: input, shape index: {}]
  %s4 = inlined_call_operand.vmem [shape: f32[2,32,8], index: 4, kind: input, shape index: {}]
  %s5 = inlined_call_operand.hbm [shape: f32[2,3,32,32], index: 5, kind: output, shape index: {}]
  %s6 = sld [smem:[#allocation0]]
  $region61: #{tpu_custom_call.1} parent=0
    _
  %s8 = ssub.s32 1, %s6
  %s9 = scalar_select 0, %s8, %s6
  $region1: #{tpu_custom_call.1} parent=0
    #allocation2 [shape = 'u8[32768]{0}', space=vmem, size = 0x8000, scoped, tag = 'input window, operand 2']
    #allocation3 [shape = 's32[2]{0}', space=sflag, size = 0x8, scoped, tag = 'scoped memory for tpu_custom_call.1']
    #allocation4 [shape = 's32[2]{0}', space=sflag, size = 0x8, scoped, tag = 'scoped memory for tpu_custom_call.1']
    #allocation5 [shape = 'u8[32768]{0}', space=vmem, size = 0x8000, scoped, tag = 'input window, operand 3']
    #allocation6 [shape = 's32[2]{0}', space=sflag, size = 0x8, scoped, tag = 'scoped memory for tpu_custom_call.1']
    #allocation7 [shape = 'u8[98304]{0}', space=vmem, size = 0x18000, scoped, tag = 'output window, operand 0']
    %10 = vsyncpa [#allocation3], 0
    %s11 = scalar_lea.sflag [#allocation3], 1
    %12 = vsyncpa %s11, 0
    %13 = vsyncpa [#allocation6], 0
    %s14 = scalar_lea.sflag [#allocation6], 1
    %15 = vsyncpa %s14, 0
    %16 = vsyncpa [#allocation4], 0
    %s17 = scalar_lea.sflag [#allocation4], 1
    %18 = vsyncpa %s17, 0
    loop: start=0, step=1, limit=4
    $region2: #{tpu_custom_call.1} parent=1 // loop_pre_header
      _
    $region3: #{tpu_custom_call.1} parent=1 // loop_header
      %s20 = sphi 0, %s24
      %p21 = scmp.ge.s32.totalorder %s20, 4
      %s27 = sphi 0, %s39
      %s28 = sphi 0, %s35
      %s29 = sphi 0, %s27
      %s30 = sphi 0, %s28
      %s31 = sphi 0, %s29
      %s32 = sphi 0, %s30
      %s40 = sphi 0, %s40
      %s42 = sphi 0, %s40
      %s43 = sphi 0, %s42
      %s57 = sphi 0, %s43
      %s61 = sphi 0, %s61
      %s63 = sphi 0, %s61
      %s64 = sphi 0, %s63
      %s78 = sphi 0, %s64
      %s86 = sphi 0, %s88
      %s89 = sphi 0, %s86
      %s90 = sphi 0, %s89
      %s106 = sphi 0, %s90
      %s114 = sphi 0, %s116
      %s117 = sphi 0, %s114
      %s118 = sphi 0, %s117
      %s134 = sphi 0, %s118
      %s142 = sphi 0, %s144
      %s145 = sphi 0, %s142
      %s146 = sphi 0, %s145
      %s162 = sphi 0, %s146
      %s170 = sphi 0, %s172
      %s173 = sphi 0, %s170
      %s174 = sphi 0, %s173
      %s190 = sphi 0, %s174
    $region4: #{tpu_custom_call.1} parent=1 // loop_header_branch
      %23 = sbr.rel (%p21) target = $region8
    $region5: #{tpu_custom_call.1} parent=1 // loop_body
      %s25 = ssub.s32 %s20, 1
      %s26 = ssub.s32 %s20, 2
      %s33 = sadd.s32 1, %s28
      %p34 = scmp.ge.s32.totalorder %s33, 1
      %s35 = scalar_select %p34, 0, %s33
      %s36 = sadd.s32 1, %s27
      %s37 = scalar_select %p34, %s36, %s27
      %p38 = scmp.ge.s32.totalorder %s37, 2
      %s39 = scalar_select %p38, 0, %s37
      %s41 = sadd.s32 %s40, 1
      %p44 = scmp.eq.s32.totalorder %s20, 1
      %p45 = scmp.ne.s32.totalorder %s40, %s42
      %p46 = scmp.eq.s32.totalorder %s20, 0
      %p47 = por %p45, %p46
      %p48 = scmp.ne.s32.totalorder %s40, %s42
      %p49 = scmp.eq.s32.totalorder %s25, 1
      %p50 = por %p48, %p49
      %p51 = scmp.ne.s32.totalorder %s42, %s43
      %p52 = scmp.eq.s32.totalorder %s25, 0
      %p53 = por %p51, %p52
      %p54 = scmp.ne.s32.totalorder %s42, %s43
      %p55 = scmp.eq.s32.totalorder %s26, 1
      %p56 = por %p54, %p55
      %p58 = scmp.ne.s32.totalorder %s43, %s57
      %p59 = scmp.eq.s32.totalorder %s26, 0
      %p60 = por %p58, %p59
      %s62 = sadd.s32 %s61, 1
      %p65 = scmp.eq.s32.totalorder %s20, 1
      %p66 = scmp.ne.s32.totalorder %s61, %s63
      %p67 = scmp.eq.s32.totalorder %s20, 0
      %p68 = por %p66, %p67
      %p69 = scmp.ne.s32.totalorder %s61, %s63
      %p70 = scmp.eq.s32.totalorder %s25, 1
      %p71 = por %p69, %p70
      %p72 = scmp.ne.s32.totalorder %s63, %s64
      %p73 = scmp.eq.s32.totalorder %s25, 0
      %p74 = por %p72, %p73
      %p75 = scmp.ne.s32.totalorder %s63, %s64
      %p76 = scmp.eq.s32.totalorder %s26, 1
      %p77 = por %p75, %p76
      %p79 = scmp.ne.s32.totalorder %s64, %s78
      %p80 = scmp.eq.s32.totalorder %s26, 0
      %p81 = por %p79, %p80
      %s82 = ssub.s32 %s27, %s39
      %s83 = ssub.s32 %s28, %s35
      %s84 = sor.u32 %s82, %s83
      %p85 = scmp.eq.s32.totalorder %s84, 0
      %s87 = sadd.s32 %s86, 1
      %s88 = scalar_select %p85, %s86, %s87
      %p91 = pneg %p85
      %p92 = scmp.eq.s32.totalorder %s20, 1
      %p93 = por %p91, %p92
      %p94 = scmp.ne.s32.totalorder %s86, %s89
      %p95 = scmp.eq.s32.totalorder %s20, 0
      %p96 = por %p94, %p95
      %p97 = scmp.ne.s32.totalorder %s86, %s89
      %p98 = scmp.eq.s32.totalorder %s25, 1
      %p99 = por %p97, %p98
      %p100 = scmp.ne.s32.totalorder %s89, %s90
      %p101 = scmp.eq.s32.totalorder %s25, 0
      %p102 = por %p100, %p101
      %p103 = scmp.ne.s32.totalorder %s89, %s90
      %p104 = scmp.eq.s32.totalorder %s26, 1
      %p105 = por %p103, %p104
      %p107 = scmp.ne.s32.totalorder %s90, %s106
      %p108 = scmp.eq.s32.totalorder %s26, 0
      %p109 = por %p107, %p108
      %s110 = ssub.s32 %s27, %s39
      %s111 = ssub.s32 %s28, %s35
      %s112 = sor.u32 %s110, %s111
      %p113 = scmp.eq.s32.totalorder %s112, 0
      %s115 = sadd.s32 %s114, 1
      %s116 = scalar_select %p113, %s114, %s115
      %p119 = pneg %p113
      %p120 = scmp.eq.s32.totalorder %s20, 1
      %p121 = por %p119, %p120
      %p122 = scmp.ne.s32.totalorder %s114, %s117
      %p123 = scmp.eq.s32.totalorder %s20, 0
      %p124 = por %p122, %p123
      %p125 = scmp.ne.s32.totalorder %s114, %s117
      %p126 = scmp.eq.s32.totalorder %s25, 1
      %p127 = por %p125, %p126
      %p128 = scmp.ne.s32.totalorder %s117, %s118
      %p129 = scmp.eq.s32.totalorder %s25, 0
      %p130 = por %p128, %p129
      %p131 = scmp.ne.s32.totalorder %s117, %s118
      %p132 = scmp.eq.s32.totalorder %s26, 1
      %p133 = por %p131, %p132
      %p135 = scmp.ne.s32.totalorder %s118, %s134
      %p136 = scmp.eq.s32.totalorder %s26, 0
      %p137 = por %p135, %p136
      %s138 = ssub.s32 %s27, %s39
      %s139 = ssub.s32 %s28, %s35
      %s140 = sor.u32 %s138, %s139
      %p141 = scmp.eq.s32.totalorder %s140, 0
      %s143 = sadd.s32 %s142, 1
      %s144 = scalar_select %p141, %s142, %s143
      %p147 = pneg %p141
      %p148 = scmp.eq.s32.totalorder %s20, 1
      %p149 = por %p147, %p148
      %p150 = scmp.ne.s32.totalorder %s142, %s145
      %p151 = scmp.eq.s32.totalorder %s20, 0
      %p152 = por %p150, %p151
      %p153 = scmp.ne.s32.totalorder %s142, %s145
      %p154 = scmp.eq.s32.totalorder %s25, 1
      %p155 = por %p153, %p154
      %p156 = scmp.ne.s32.totalorder %s145, %s146
      %p157 = scmp.eq.s32.totalorder %s25, 0
      %p158 = por %p156, %p157
      %p159 = scmp.ne.s32.totalorder %s145, %s146
      %p160 = scmp.eq.s32.totalorder %s26, 1
      %p161 = por %p159, %p160
      %p163 = scmp.ne.s32.totalorder %s146, %s162
      %p164 = scmp.eq.s32.totalorder %s26, 0
      %p165 = por %p163, %p164
      %s166 = ssub.s32 %s27, %s39
      %s167 = ssub.s32 %s28, %s35
      %s168 = sor.u32 %s166, %s167
      %p169 = scmp.eq.s32.totalorder %s168, 0
      %s171 = sadd.s32 %s170, 1
      %s172 = scalar_select %p169, %s170, %s171
      %p175 = pneg %p169
      %p176 = scmp.eq.s32.totalorder %s20, 1
      %p177 = por %p175, %p176
      %p178 = scmp.ne.s32.totalorder %s170, %s173
      %p179 = scmp.eq.s32.totalorder %s20, 0
      %p180 = por %p178, %p179
      %p181 = scmp.ne.s32.totalorder %s170, %s173
      %p182 = scmp.eq.s32.totalorder %s25, 1
      %p183 = por %p181, %p182
      %p184 = scmp.ne.s32.totalorder %s173, %s174
      %p185 = scmp.eq.s32.totalorder %s25, 0
      %p186 = por %p184, %p185
      %p187 = scmp.ne.s32.totalorder %s173, %s174
      %p188 = scmp.eq.s32.totalorder %s26, 1
      %p189 = por %p187, %p188
      %p191 = scmp.ne.s32.totalorder %s174, %s190
      %p192 = scmp.eq.s32.totalorder %s26, 0
      %p193 = por %p191, %p192
      %p194 = scmp.le.s32.totalorder 1, %s20
      %p195 = scmp.lt.s32.totalorder %s20, 3
      %p196 = pnand %p194, %p195
      %p197 = pneg %p196
      // Predicated region
      $region9: #{tpu_custom_call.1} parent=5 // pred_check
        _
      $region10: #{tpu_custom_call.1} parent=5 // pred_check_branch
        %199 = sbr.rel (%p196) target = $region12
      $region11: #{tpu_custom_call.1} parent=5 // pred_region
        %s200 = ssub.s32 %s20, 1
        // Predicated region
        $region13: #{tpu_custom_call.1} parent=11 // pred_check
          %p201 = pneg %p53
        $region14: #{tpu_custom_call.1} parent=11 // pred_check_branch
          %203 = sbr.rel (%p201) target = $region16
        $region15: #{tpu_custom_call.1} parent=11 // pred_region
          _
        $region16: #{tpu_custom_call.1} parent=11 // pred_fallthru
          _
        // Predicated region
        $region17: #{tpu_custom_call.1} parent=11 // pred_check
          %p204 = pneg %p74
        $region18: #{tpu_custom_call.1} parent=11 // pred_check_branch
          %206 = sbr.rel (%p204) target = $region20
        $region19: #{tpu_custom_call.1} parent=11 // pred_region
          _
        $region20: #{tpu_custom_call.1} parent=11 // pred_fallthru
          _
      $region12: #{tpu_custom_call.1} parent=5 // pred_fallthru
        _
      %p207 = scmp.lt.s32.totalorder %s20, 2
      // Predicated region
      $region21: #{tpu_custom_call.1} parent=5 // pred_check
        %p208 = pneg %p207
      $region22: #{tpu_custom_call.1} parent=5 // pred_check_branch
        %210 = sbr.rel (%p208) target = $region24
      $region23: #{tpu_custom_call.1} parent=5 // pred_region
        // Predicated region
        $region25: #{tpu_custom_call.1} parent=23 // pred_check
          %p211 = pneg %p96
        $region26: #{tpu_custom_call.1} parent=23 // pred_check_branch
          %213 = sbr.rel (%p211) target = $region28
        $region27: #{tpu_custom_call.1} parent=23 // pred_region
          %s214 = sand.u32 %s86, 1
          %s215 = scalar_lea.sflag [#allocation3], %s214
          %s216 = sand.u32 %s86, 1
          %s217 = smul.addr %s216, 32
          %s218 = scalar_lea.vmem [#allocation2], %s217
          %s219 = smul.u32 4, %s28
          %221 = vsyncadd %s215, 0
          %s222 = smul.addr %s27, 4
          %s223 = sadd.s32 %s219, %s222
          %s224 = smul.addr %s223, 8
          %s225 = scalar_lea.hbm %s2, %s224
          %s226 = sshll.u32 %s225, 4
          %s227 = int_to_ptr.hbm [resolvable:$true] %s226
          %s228 = sshll.u32 %s218, 4
          %s229 = int_to_ptr.vmem [resolvable:$true] %s228
          %234 = dma.hbm_to_vmem [thread:$0]  %s227, 512, %s229, %s215, 128, 128, 8
        $region28: #{tpu_custom_call.1} parent=23 // pred_fallthru
          _
        // Predicated region
        $region29: #{tpu_custom_call.1} parent=23 // pred_check
          %p235 = pneg %p124
        $region30: #{tpu_custom_call.1} parent=23 // pred_check_branch
          %237 = sbr.rel (%p235) target = $region32
        $region31: #{tpu_custom_call.1} parent=23 // pred_region
          %s238 = sand.u32 %s114, 1
          %s239 = scalar_lea.sflag [#allocation6], %s238
          %s240 = sand.u32 %s114, 1
          %s241 = smul.addr %s240, 32
          %s242 = scalar_lea.vmem [#allocation5], %s241
          %s243 = smul.u32 4, %s28
          %245 = vsyncadd %s239, 0
          %s246 = smul.addr %s27, 4
          %s247 = sadd.s32 %s243, %s246
          %s248 = smul.addr %s247, 8
          %s249 = scalar_lea.hbm %s3, %s248
          %s250 = sshll.u32 %s249, 4
          %s251 = int_to_ptr.hbm [resolvable:$true] %s250
          %s252 = sshll.u32 %s242, 4
          %s253 = int_to_ptr.vmem [resolvable:$true] %s252
          %258 = dma.hbm_to_vmem [thread:$0]  %s251, 512, %s253, %s239, 128, 128, 8
        $region32: #{tpu_custom_call.1} parent=23 // pred_fallthru
          _
        // Predicated region
        $region33: #{tpu_custom_call.1} parent=23 // pred_check
          %p259 = pneg %p152
        $region34: #{tpu_custom_call.1} parent=23 // pred_check_branch
          %261 = sbr.rel (%p259) target = $region36
        $region35: #{tpu_custom_call.1} parent=23 // pred_region
          %s262 = smul.u32 4, %s28
          %p263 = scmp.lt.s32.totalorder %s27, 1
          %s264 = scalar_select %p263, %s27, 1
          %p265 = scmp.lt.s32.totalorder %s262, 3
          %s266 = scalar_select %p265, %s262, 3
          %s267 = smul.addr %s264, 4
          %s268 = sadd.s32 %s266, %s267
          %s269 = smul.addr %s268, 8
          %s270 = scalar_lea.vmem %s4, %s269
          %s271 = smul.u32 4, %s28
        $region36: #{tpu_custom_call.1} parent=23 // pred_fallthru
          _
      $region24: #{tpu_custom_call.1} parent=5 // pred_fallthru
        _
      %p272 = scmp.le.s32.totalorder 1, %s20
      %p273 = scmp.lt.s32.totalorder %s20, 3
      %p274 = pnand %p272, %p273
      %p275 = pneg %p274
      // Predicated region
      $region37: #{tpu_custom_call.1} parent=5 // pred_check
        _
      $region38: #{tpu_custom_call.1} parent=5 // pred_check_branch
        %277 = sbr.rel (%p274) target = $region40
      $region39: #{tpu_custom_call.1} parent=5 // pred_region
        %s278 = ssub.s32 %s20, 1
        %s279 = sand.u32 %s89, 1
        %s280 = scalar_lea.sflag [#allocation3], %s279
        %s281 = sand.u32 %s89, 1
        %s282 = smul.addr %s281, 32
        %s283 = scalar_lea.vmem [#allocation2], %s282
        // Predicated region
        $region41: #{tpu_custom_call.1} parent=39 // pred_check
          %p284 = pneg %p102
        $region42: #{tpu_custom_call.1} parent=39 // pred_check_branch
          %286 = sbr.rel (%p284) target = $region44
        $region43: #{tpu_custom_call.1} parent=39 // pred_region
          %288 = dma.done %s280, 512
        $region44: #{tpu_custom_call.1} parent=39 // pred_fallthru
          _
        %s289 = sand.u32 %s117, 1
        %s290 = scalar_lea.sflag [#allocation6], %s289
        %s291 = sand.u32 %s117, 1
        %s292 = smul.addr %s291, 32
        %s293 = scalar_lea.vmem [#allocation5], %s292
        // Predicated region
        $region45: #{tpu_custom_call.1} parent=39 // pred_check
          %p294 = pneg %p130
        $region46: #{tpu_custom_call.1} parent=39 // pred_check_branch
          %296 = sbr.rel (%p294) target = $region48
        $region47: #{tpu_custom_call.1} parent=39 // pred_region
          %298 = dma.done %s290, 512
        $region48: #{tpu_custom_call.1} parent=39 // pred_fallthru
          _
        %p299 = pneg %p53
        %p300 = pneg %p50
        %p301 = pneg %p74
        %p302 = pneg %p71
        %s303 = sand.u32 %s89, 1
        %s304 = scalar_lea.sflag [#allocation3], %s303
        %s305 = sand.u32 %s89, 1
        %s306 = smul.addr %s305, 32
        %s307 = scalar_lea.vmem [#allocation2], %s306
        %p308 = pneg %p102
        %p309 = pneg %p99
        %s310 = sand.u32 %s117, 1
        %s311 = scalar_lea.sflag [#allocation6], %s310
        %s312 = sand.u32 %s117, 1
        %s313 = smul.addr %s312, 32
        %s314 = scalar_lea.vmem [#allocation5], %s313
        %p315 = pneg %p130
        %p316 = pneg %p127
        %s317 = smul.u32 4, %s30
        %p318 = scmp.lt.s32.totalorder %s29, 1
        %s319 = scalar_select %p318, %s29, 1
        %p320 = scmp.lt.s32.totalorder %s317, 3
        %s321 = scalar_select %p320, %s317, 3
        %s322 = smul.addr %s319, 4
        %s323 = sadd.s32 %s321, %s322
        %s324 = smul.addr %s323, 8
        %s325 = scalar_lea.vmem %s4, %s324
        %p326 = pneg %p158
        %p327 = pneg %p155
        %p328 = pneg %p186
        %p329 = pneg %p183
        %s330 = sand.u32 %s173, 1
        %s331 = scalar_lea.sflag [#allocation4], %s330
        %s332 = sand.u32 %s173, 1
        %s333 = smul.addr %s332, 96
        %s334 = scalar_lea.vmem [#allocation7], %s333
        %s335 = smul.u32 4, %s30
        %s336 = smul.u32 4, %s30
        %s337 = smul.u32 4, %s30
        %p338 = scmp.lt.s32.totalorder %s29, 1
        %s339 = scalar_select %p338, %s29, 1
        %p340 = scmp.lt.s32.totalorder %s337, 3
        %s341 = scalar_select %p340, %s337, 3
        %s342 = smul.addr %s339, 4
        %s343 = sadd.s32 %s341, %s342
        %s344 = smul.addr %s343, 8
        %s345 = scalar_lea.vmem %s4, %s344
        %s346 = smul.u32 4, %s30
        %s347 = smul.u32 4, %s30
        %v349 = vld [vmem:[%s0] sm:$0xf]
        %v350 = vld [vmem:[%s0 + $0x4] sm:$0xf]
        %v351 = vld [vmem:[%s0 + $0x8] sm:$0xf]
        %v352 = vld [vmem:[%s0 + $0xc] sm:$0xf]
        %s353 = scalar_lea.vmem %s0, 16
        %v354 = vld [vmem:[%s353] sm:$0xf]
        %v355 = vld [vmem:[%s353 + $0x4] sm:$0xf]
        %v356 = vld [vmem:[%s353 + $0x8] sm:$0xf]
        %v357 = vld [vmem:[%s353 + $0xc] sm:$0xf]
        %s358 = scalar_lea.vmem %s0, 32
        %v359 = vld [vmem:[%s358] sm:$0xf]
        %v360 = vld [vmem:[%s358 + $0x4] sm:$0xf]
        %v361 = vld [vmem:[%s358 + $0x8] sm:$0xf]
        %v362 = vld [vmem:[%s358 + $0xc] sm:$0xf]
        %s363 = scalar_lea.vmem %s0, 48
        %v364 = vld [vmem:[%s363] sm:$0xf]
        %v365 = vld [vmem:[%s363 + $0x4] sm:$0xf]
        %v366 = vld [vmem:[%s363 + $0x8] sm:$0xf]
        %v367 = vld [vmem:[%s363 + $0xc] sm:$0xf]
        %v368 = vld [vmem:[%s283] sm:$0xff]
        %v369 = vld [vmem:[%s283 + $0x8] sm:$0xff]
        %v370 = vld [vmem:[%s283 + $0x10] sm:$0xff]
        %v371 = vld [vmem:[%s283 + $0x18] sm:$0xff]
        %376 = vrot.lane.b32.xlu0 %v368, 96
        %v377 = vpop.permute.xlu0 %376
        %378 = vrot.lane.b32.xlu0 %v369, 96
        %v379 = vpop.permute.xlu0 %378
        %380 = vrot.lane.b32.xlu0 %v370, 96
        %v381 = vpop.permute.xlu0 %380
        %382 = vrot.lane.b32.xlu0 %v371, 96
        %v383 = vpop.permute.xlu0 %382
        %v388 = vmax.f32 %v368, %v377
        %v389 = vmax.f32 %v369, %v379
        %v390 = vmax.f32 %v370, %v381
        %v391 = vmax.f32 %v371, %v383
        %v392 = vadd.f32 %v368, %v377
        %v393 = vadd.f32 %v369, %v379
        %v394 = vadd.f32 %v370, %v381
        %v395 = vadd.f32 %v371, %v383
        %v396 = vmul.f32 %v388, 0.5
        %v397 = vmul.f32 %v389, 0.5
        %v398 = vmul.f32 %v390, 0.5
        %v399 = vmul.f32 %v391, 0.5
        %v400 = vmul.f32 %v392, 0.25
        %v401 = vmul.f32 %v393, 0.25
        %v402 = vmul.f32 %v394, 0.25
        %v403 = vmul.f32 %v395, 0.25
        %v404 = vadd.f32 %v396, %v400
        %v405 = vadd.f32 %v397, %v401
        %v406 = vadd.f32 %v398, %v402
        %v407 = vadd.f32 %v399, %v403
        %v408 = vpack.c.bf16 %v404, %v404
        %v409 = vpack.c.bf16 %v405, %v405
        %v410 = vpack.c.bf16 %v406, %v406
        %v411 = vpack.c.bf16 %v407, %v407
        %v412 = vunpack.c.l.bf16 %v408
        %v413 = vunpack.c.l.bf16 %v409
        %v414 = vunpack.c.l.bf16 %v410
        %v415 = vunpack.c.l.bf16 %v411
        %v416 = vsub.f32 %v404, %v412
        %v417 = vsub.f32 %v405, %v413
        %v418 = vsub.f32 %v406, %v414
        %v419 = vsub.f32 %v407, %v415
        %v420 = vpack.c.bf16 %v417, %v416
        %v421 = vpack.c.bf16 %v419, %v418
        %v426 = vunpack.c.l.b16 %v349
        %v427 = vunpack.c.l.b16 %v350
        %v428 = vunpack.c.l.b16 %v351
        %v429 = vunpack.c.l.b16 %v352
        %v430 = vpack.c.b16 %v427, %v426
        %v431 = vpack.c.b16 %v429, %v428
        %vm434 = vcmask 261120
        %v436 = vsel %vm434, %v420, 0
        %v439 = vsel %vm434, %v421, 0
        %441 = vmatpush.bf16.msra.mxu0 0
        %442 = vmatpush.bf16.msra.mxu0 0
        %443 = vmatpush.bf16.msra.mxu0 0
        %444 = vmatpush.bf16.msra.mxu0 0
        %445 = vmatpush.bf16.msra.mxu0 0
        %446 = vmatpush.bf16.msra.mxu0 0
        %447 = vmatpush.bf16.msra.mxu0 %v431
        %448 = vmatpush.bf16.msra.mxu0 %v430
        %449 = vmatmul.bf16.gmra.mxu0 %v436
        %v450 = vpop.f32.mrf.mxu0
        %v451 = vadd.f32 0.0, %v450
        %v452 = vpop.f32.mrf.mxu0
        %v453 = vadd.f32 0.0, %v452
        %454 = vmatmul.bf16.gmra.mxu0 %v439
        %v455 = vpop.f32.mrf.mxu0
        %v456 = vadd.f32 0.0, %v455
        %v457 = vpop.f32.mrf.mxu0
        %v458 = vadd.f32 0.0, %v457
        %459 = vdwg.mxu0
        %v464 = vunpack.c.l.b16 %v408
        %v465 = vunpack.c.l.b16 %v409
        %v466 = vunpack.c.l.b16 %v410
        %v467 = vunpack.c.l.b16 %v411
        %v468 = vpack.c.b16 %v465, %v464
        %v469 = vpack.c.b16 %v467, %v466
        %v471 = vsel %vm434, %v468, 0
        %v474 = vsel %vm434, %v469, 0
        %476 = vmatpush.bf16.msra.mxu0 0
        %477 = vmatpush.bf16.msra.mxu0 0
        %478 = vmatpush.bf16.msra.mxu0 0
        %479 = vmatpush.bf16.msra.mxu0 0
        %480 = vmatpush.bf16.msra.mxu0 0
        %481 = vmatpush.bf16.msra.mxu0 0
        %482 = vmatpush.bf16.msra.mxu0 %v431
        %483 = vmatpush.bf16.msra.mxu0 %v430
        %484 = vmatmul.bf16.gmra.mxu0 %v471
        %v485 = vpop.f32.mrf.mxu0
        %v486 = vadd.f32 %v451, %v485
        %v487 = vpop.f32.mrf.mxu0
        %v488 = vadd.f32 %v453, %v487
        %489 = vmatmul.bf16.gmra.mxu0 %v474
        %v490 = vpop.f32.mrf.mxu0
        %v491 = vadd.f32 %v456, %v490
        %v492 = vpop.f32.mrf.mxu0
        %v493 = vadd.f32 %v458, %v492
        %494 = vdwg.mxu0
        %497 = vrot.lane.b32.xlu0 %v420, 64
        %v498 = vpop.permute.xlu0 %497
        %499 = vrot.lane.b32.xlu0 %v421, 64
        %v500 = vpop.permute.xlu0 %499
        %v505 = vunpack.c.l.b16 %v354
        %v506 = vunpack.c.l.b16 %v355
        %v507 = vunpack.c.l.b16 %v356
        %v508 = vunpack.c.l.b16 %v357
        %v509 = vpack.c.b16 %v506, %v505
        %v510 = vpack.c.b16 %v508, %v507
        %v514 = vsel %vm434, %v498, 0
        %v517 = vsel %vm434, %v500, 0
        %519 = vmatpush.bf16.msra.mxu0 0
        %520 = vmatpush.bf16.msra.mxu0 0
        %521 = vmatpush.bf16.msra.mxu0 0
        %522 = vmatpush.bf16.msra.mxu0 0
        %523 = vmatpush.bf16.msra.mxu0 0
        %524 = vmatpush.bf16.msra.mxu0 0
        %525 = vmatpush.bf16.msra.mxu0 %v510
        %526 = vmatpush.bf16.msra.mxu0 %v509
        %527 = vmatmul.bf16.gmra.mxu0 %v514
        %v528 = vpop.f32.mrf.mxu0
        %v529 = vadd.f32 0.0, %v528
        %v530 = vpop.f32.mrf.mxu0
        %v531 = vadd.f32 0.0, %v530
        %532 = vmatmul.bf16.gmra.mxu0 %v517
        %v533 = vpop.f32.mrf.mxu0
        %v534 = vadd.f32 0.0, %v533
        %v535 = vpop.f32.mrf.mxu0
        %v536 = vadd.f32 0.0, %v535
        %537 = vdwg.mxu0
        %538 = vrot.lane.b32.xlu0 %v468, 64
        %v539 = vpop.permute.xlu0 %538
        %540 = vrot.lane.b32.xlu0 %v469, 64
        %v541 = vpop.permute.xlu0 %540
        %v543 = vsel %vm434, %v539, 0
        %v546 = vsel %vm434, %v541, 0
        %548 = vmatpush.bf16.msra.mxu0 0
        %549 = vmatpush.bf16.msra.mxu0 0
        %550 = vmatpush.bf16.msra.mxu0 0
        %551 = vmatpush.bf16.msra.mxu0 0
        %552 = vmatpush.bf16.msra.mxu0 0
        %553 = vmatpush.bf16.msra.mxu0 0
        %554 = vmatpush.bf16.msra.mxu0 %v510
        %555 = vmatpush.bf16.msra.mxu0 %v509
        %556 = vmatmul.bf16.gmra.mxu0 %v543
        %v557 = vpop.f32.mrf.mxu0
        %v558 = vadd.f32 %v529, %v557
        %v559 = vpop.f32.mrf.mxu0
        %v560 = vadd.f32 %v531, %v559
        %561 = vmatmul.bf16.gmra.mxu0 %v546
        %v562 = vpop.f32.mrf.mxu0
        %v563 = vadd.f32 %v534, %v562
        %v564 = vpop.f32.mrf.mxu0
        %v565 = vadd.f32 %v536, %v564
        %566 = vdwg.mxu0
        %v567 = vadd.f32 %v486, %v558
        %v568 = vadd.f32 %v488, %v560
        %v569 = vadd.f32 %v491, %v563
        %v570 = vadd.f32 %v493, %v565
        %v571 = vpack.c.bf16 %v388, %v388
        %v572 = vpack.c.bf16 %v389, %v389
        %v573 = vpack.c.bf16 %v390, %v390
        %v574 = vpack.c.bf16 %v391, %v391
        %v575 = vunpack.c.l.bf16 %v571
        %v576 = vunpack.c.l.bf16 %v572
        %v577 = vunpack.c.l.bf16 %v573
        %v578 = vunpack.c.l.bf16 %v574
        %v579 = vsub.f32 %v388, %v575
        %v580 = vsub.f32 %v389, %v576
        %v581 = vsub.f32 %v390, %v577
        %v582 = vsub.f32 %v391, %v578
        %v583 = vpack.c.bf16 %v580, %v579
        %v584 = vpack.c.bf16 %v582, %v581
        %v589 = vunpack.c.l.b16 %v359
        %v590 = vunpack.c.l.b16 %v360
        %v591 = vunpack.c.l.b16 %v361
        %v592 = vunpack.c.l.b16 %v362
        %v593 = vpack.c.b16 %v590, %v589
        %v594 = vpack.c.b16 %v592, %v591
        %v598 = vsel %vm434, %v583, 0
        %v601 = vsel %vm434, %v584, 0
        %603 = vmatpush.bf16.msra.mxu0 0
        %604 = vmatpush.bf16.msra.mxu0 0
        %605 = vmatpush.bf16.msra.mxu0 0
        %606 = vmatpush.bf16.msra.mxu0 0
        %607 = vmatpush.bf16.msra.mxu0 0
        %608 = vmatpush.bf16.msra.mxu0 0
        %609 = vmatpush.bf16.msra.mxu0 %v594
        %610 = vmatpush.bf16.msra.mxu0 %v593
        %611 = vmatmul.bf16.gmra.mxu0 %v598
        %v612 = vpop.f32.mrf.mxu0
        %v613 = vadd.f32 0.0, %v612
        %v614 = vpop.f32.mrf.mxu0
        %v615 = vadd.f32 0.0, %v614
        %616 = vmatmul.bf16.gmra.mxu0 %v601
        %v617 = vpop.f32.mrf.mxu0
        %v618 = vadd.f32 0.0, %v617
        %v619 = vpop.f32.mrf.mxu0
        %v620 = vadd.f32 0.0, %v619
        %621 = vdwg.mxu0
        %v626 = vunpack.c.l.b16 %v571
        %v627 = vunpack.c.l.b16 %v572
        %v628 = vunpack.c.l.b16 %v573
        %v629 = vunpack.c.l.b16 %v574
        %v630 = vpack.c.b16 %v627, %v626
        %v631 = vpack.c.b16 %v629, %v628
        %v633 = vsel %vm434, %v630, 0
        %v636 = vsel %vm434, %v631, 0
        %638 = vmatpush.bf16.msra.mxu0 0
        %639 = vmatpush.bf16.msra.mxu0 0
        %640 = vmatpush.bf16.msra.mxu0 0
        %641 = vmatpush.bf16.msra.mxu0 0
        %642 = vmatpush.bf16.msra.mxu0 0
        %643 = vmatpush.bf16.msra.mxu0 0
        %644 = vmatpush.bf16.msra.mxu0 %v594
        %645 = vmatpush.bf16.msra.mxu0 %v593
        %646 = vmatmul.bf16.gmra.mxu0 %v633
        %v647 = vpop.f32.mrf.mxu0
        %v648 = vadd.f32 %v613, %v647
        %v649 = vpop.f32.mrf.mxu0
        %v650 = vadd.f32 %v615, %v649
        %651 = vmatmul.bf16.gmra.mxu0 %v636
        %v652 = vpop.f32.mrf.mxu0
        %v653 = vadd.f32 %v618, %v652
        %v654 = vpop.f32.mrf.mxu0
        %v655 = vadd.f32 %v620, %v654
        %656 = vdwg.mxu0
        %659 = vrot.lane.b32.xlu0 %v583, 64
        %v660 = vpop.permute.xlu0 %659
        %661 = vrot.lane.b32.xlu0 %v584, 64
        %v662 = vpop.permute.xlu0 %661
        %v667 = vunpack.c.l.b16 %v364
        %v668 = vunpack.c.l.b16 %v365
        %v669 = vunpack.c.l.b16 %v366
        %v670 = vunpack.c.l.b16 %v367
        %v671 = vpack.c.b16 %v668, %v667
        %v672 = vpack.c.b16 %v670, %v669
        %v676 = vsel %vm434, %v660, 0
        %v679 = vsel %vm434, %v662, 0
        %681 = vmatpush.bf16.msra.mxu0 0
        %682 = vmatpush.bf16.msra.mxu0 0
        %683 = vmatpush.bf16.msra.mxu0 0
        %684 = vmatpush.bf16.msra.mxu0 0
        %685 = vmatpush.bf16.msra.mxu0 0
        %686 = vmatpush.bf16.msra.mxu0 0
        %687 = vmatpush.bf16.msra.mxu0 %v672
        %688 = vmatpush.bf16.msra.mxu0 %v671
        %689 = vmatmul.bf16.gmra.mxu0 %v676
        %v690 = vpop.f32.mrf.mxu0
        %v691 = vadd.f32 0.0, %v690
        %v692 = vpop.f32.mrf.mxu0
        %v693 = vadd.f32 0.0, %v692
        %694 = vmatmul.bf16.gmra.mxu0 %v679
        %v695 = vpop.f32.mrf.mxu0
        %v696 = vadd.f32 0.0, %v695
        %v697 = vpop.f32.mrf.mxu0
        %v698 = vadd.f32 0.0, %v697
        %699 = vdwg.mxu0
        %700 = vrot.lane.b32.xlu0 %v630, 64
        %v701 = vpop.permute.xlu0 %700
        %702 = vrot.lane.b32.xlu0 %v631, 64
        %v703 = vpop.permute.xlu0 %702
        %v705 = vsel %vm434, %v701, 0
        %v708 = vsel %vm434, %v703, 0
        %710 = vmatpush.bf16.msra.mxu0 0
        %711 = vmatpush.bf16.msra.mxu0 0
        %712 = vmatpush.bf16.msra.mxu0 0
        %713 = vmatpush.bf16.msra.mxu0 0
        %714 = vmatpush.bf16.msra.mxu0 0
        %715 = vmatpush.bf16.msra.mxu0 0
        %716 = vmatpush.bf16.msra.mxu0 %v672
        %717 = vmatpush.bf16.msra.mxu0 %v671
        %718 = vmatmul.bf16.gmra.mxu0 %v705
        %v719 = vpop.f32.mrf.mxu0
        %v720 = vadd.f32 %v691, %v719
        %v721 = vpop.f32.mrf.mxu0
        %v722 = vadd.f32 %v693, %v721
        %723 = vmatmul.bf16.gmra.mxu0 %v708
        %v724 = vpop.f32.mrf.mxu0
        %v725 = vadd.f32 %v696, %v724
        %v726 = vpop.f32.mrf.mxu0
        %v727 = vadd.f32 %v698, %v726
        %728 = vdwg.mxu0
        %v729 = vadd.f32 %v648, %v720
        %v730 = vadd.f32 %v650, %v722
        %v731 = vadd.f32 %v653, %v725
        %v732 = vadd.f32 %v655, %v727
        %v733 = vand.u32 2147483647, %v729
        %v734 = vand.u32 2147483647, %v730
        %v735 = vand.u32 2147483647, %v731
        %v736 = vand.u32 2147483647, %v732
        %v737 = vmul.f32 %v733, 0.5
        %v738 = vmul.f32 %v734, 0.5
        %v739 = vmul.f32 %v735, 0.5
        %v740 = vmul.f32 %v736, 0.5
        %v741 = vadd.f32 %v567, %v737
        %v742 = vadd.f32 %v568, %v738
        %v743 = vadd.f32 %v569, %v739
        %v744 = vadd.f32 %v570, %v740
        %745 = vst.msk [vmem:[%s334] sm:$0xff] %vm434, %v741
        %746 = vst.msk [vmem:[%s334 + $0x8] sm:$0xff] %vm434, %v742
        %747 = vst.msk [vmem:[%s334 + $0x10] sm:$0xff] %vm434, %v743
        %748 = vst.msk [vmem:[%s334 + $0x18] sm:$0xff] %vm434, %v744
        %v749 = vld [vmem:[%s293] sm:$0xff]
        %v750 = vld [vmem:[%s293 + $0x8] sm:$0xff]
        %v751 = vld [vmem:[%s293 + $0x10] sm:$0xff]
        %v752 = vld [vmem:[%s293 + $0x18] sm:$0xff]
        %s753 = scalar_lea.vmem %s334, 32 [#allocation7]
        %754 = vst.msk [vmem:[%s753] sm:$0xff] %vm434, %v749
        %755 = vst.msk [vmem:[%s753 + $0x8] sm:$0xff] %vm434, %v750
        %756 = vst.msk [vmem:[%s753 + $0x10] sm:$0xff] %vm434, %v751
        %757 = vst.msk [vmem:[%s753 + $0x18] sm:$0xff] %vm434, %v752
        %v758 = vld [vmem:[%s345] sm:$0xff]
        %v759 = vld [vmem:[%s345 + $0x8] sm:$0xff]
        %v760 = vld [vmem:[%s345 + $0x10] sm:$0xff]
        %v761 = vld [vmem:[%s345 + $0x18] sm:$0xff]
        %v762 = vld [vmem:[%s1] sm:$0xf]
        %v763 = vpack.c.bf16 %v758, %v758
        %v764 = vpack.c.bf16 %v759, %v759
        %v765 = vpack.c.bf16 %v760, %v760
        %v766 = vpack.c.bf16 %v761, %v761
        %v767 = vunpack.c.l.bf16 %v763
        %v768 = vunpack.c.l.bf16 %v764
        %v769 = vunpack.c.l.bf16 %v765
        %v770 = vunpack.c.l.bf16 %v766
        %v771 = vsub.f32 %v758, %v767
        %v772 = vsub.f32 %v759, %v768
        %v773 = vsub.f32 %v760, %v769
        %v774 = vsub.f32 %v761, %v770
        %v775 = vpack.c.bf16 %v772, %v771
        %v776 = vpack.c.bf16 %v774, %v773
        %vm777 = vcmask 64512
        %v779 = vsel %vm777, %v775, 0
        %v782 = vsel %vm777, %v776, 0
        %vm784 = vcmask 1043456
        %v786 = vsel %vm784, %v762, 0
        %788 = vmatpush.bf16.msra.mxu0 0
        %789 = vmatpush.bf16.msra.mxu0 0
        %790 = vmatpush.bf16.msra.mxu0 0
        %791 = vmatpush.bf16.msra.mxu0 0
        %792 = vmatpush.bf16.msra.mxu0 0
        %793 = vmatpush.bf16.msra.mxu0 0
        %794 = vmatpush.bf16.msra.mxu0 0
        %795 = vmatpush.bf16.msra.mxu0 %v786
        %796 = vmatmul.bf16.gmra.mxu0 %v779
        %v797 = vpop.f32.mrf.mxu0
        %v798 = vadd.f32 0.0, %v797
        %v799 = vpop.f32.mrf.mxu0
        %v800 = vadd.f32 0.0, %v799
        %801 = vmatmul.bf16.gmra.mxu0 %v782
        %v802 = vpop.f32.mrf.mxu0
        %v803 = vadd.f32 0.0, %v802
        %v804 = vpop.f32.mrf.mxu0
        %v805 = vadd.f32 0.0, %v804
        %806 = vdwg.mxu0
        %v811 = vunpack.c.l.b16 %v763
        %v812 = vunpack.c.l.b16 %v764
        %v813 = vunpack.c.l.b16 %v765
        %v814 = vunpack.c.l.b16 %v766
        %v815 = vpack.c.b16 %v812, %v811
        %v816 = vpack.c.b16 %v814, %v813
        %v818 = vsel %vm777, %v815, 0
        %v821 = vsel %vm777, %v816, 0
        %823 = vmatpush.bf16.msra.mxu0 0
        %824 = vmatpush.bf16.msra.mxu0 0
        %825 = vmatpush.bf16.msra.mxu0 0
        %826 = vmatpush.bf16.msra.mxu0 0
        %827 = vmatpush.bf16.msra.mxu0 0
        %828 = vmatpush.bf16.msra.mxu0 0
        %829 = vmatpush.bf16.msra.mxu0 0
        %830 = vmatpush.bf16.msra.mxu0 %v786
        %831 = vmatmul.bf16.gmra.mxu0 %v818
        %v832 = vpop.f32.mrf.mxu0
        %v833 = vadd.f32 %v798, %v832
        %v834 = vpop.f32.mrf.mxu0
        %v835 = vadd.f32 %v800, %v834
        %836 = vmatmul.bf16.gmra.mxu0 %v821
        %v837 = vpop.f32.mrf.mxu0
        %v838 = vadd.f32 %v803, %v837
        %v839 = vpop.f32.mrf.mxu0
        %v840 = vadd.f32 %v805, %v839
        %841 = vdwg.mxu0
        %s842 = scalar_lea.vmem %s334, 64 [#allocation7]
        %843 = vst.msk [vmem:[%s842] sm:$0xff] %vm434, %v833
        %844 = vst.msk [vmem:[%s842 + $0x8] sm:$0xff] %vm434, %v835
        %845 = vst.msk [vmem:[%s842 + $0x10] sm:$0xff] %vm434, %v838
        %846 = vst.msk [vmem:[%s842 + $0x18] sm:$0xff] %vm434, %v840
        %s847 = sand.u32 %s173, 1
        %s848 = scalar_lea.sflag [#allocation4], %s847
        %s849 = sand.u32 %s173, 1
        %s850 = smul.addr %s849, 96
        %s851 = scalar_lea.vmem [#allocation7], %s850
        // Predicated region
        $region49: #{tpu_custom_call.1} parent=39 // pred_check
          %p852 = pneg %p183
        $region50: #{tpu_custom_call.1} parent=39 // pred_check_branch
          %854 = sbr.rel (%p852) target = $region52
        $region51: #{tpu_custom_call.1} parent=39 // pred_region
          %s855 = smul.u32 4, %s30
          %857 = vsyncadd %s848, 0
          %s858 = smul.addr %s29, 12
          %s859 = sadd.s32 %s855, %s858
          %s860 = smul.addr %s859, 8
          %s861 = scalar_lea.hbm %s5, %s860
          %s862 = sshll.u32 %s851, 4
          %s863 = int_to_ptr.vmem [resolvable:$true] %s862
          %s864 = sshll.u32 %s861, 4
          %s865 = int_to_ptr.hbm [resolvable:$true] %s864
          %870 = dma.vmem_to_hbm [thread:$0]  %s863, 1536, %s865, %s848, 128, 128, 8
        $region52: #{tpu_custom_call.1} parent=39 // pred_fallthru
          _
      $region40: #{tpu_custom_call.1} parent=5 // pred_fallthru
        _
      %p871 = scmp.le.s32.totalorder 2, %s20
      // Predicated region
      $region53: #{tpu_custom_call.1} parent=5 // pred_check
        %p872 = pneg %p871
      $region54: #{tpu_custom_call.1} parent=5 // pred_check_branch
        %874 = sbr.rel (%p872) target = $region56
      $region55: #{tpu_custom_call.1} parent=5 // pred_region
        %s875 = ssub.s32 %s20, 2
        // Predicated region
        $region57: #{tpu_custom_call.1} parent=55 // pred_check
          %p876 = pneg %p189
        $region58: #{tpu_custom_call.1} parent=55 // pred_check_branch
          %878 = sbr.rel (%p876) target = $region60
        $region59: #{tpu_custom_call.1} parent=55 // pred_region
          %s879 = sand.u32 %s174, 1
          %s880 = scalar_lea.sflag [#allocation4], %s879
          %s881 = sand.u32 %s174, 1
          %s882 = smul.addr %s881, 96
          %s883 = scalar_lea.vmem [#allocation7], %s882
          %885 = dma.done %s880, 1536
        $region60: #{tpu_custom_call.1} parent=55 // pred_fallthru
          _
      $region56: #{tpu_custom_call.1} parent=5 // pred_fallthru
        _
    $region6: #{tpu_custom_call.1} parent=1 // loop_footer
      %s24 = sadd.s32 1, %s20
    $region7: #{tpu_custom_call.1} parent=1 // loop_footer_branch
      %19 = sbr.rel target = $region3
    $region8: #{tpu_custom_call.1} parent=1 // loop_exit
      _
    %886 = vsyncpa [#allocation3], 1
    %s887 = scalar_lea.sflag [#allocation3], 1
    %888 = vsyncpa %s887, 1
    %889 = vsyncpa [#allocation6], 1
    %s890 = scalar_lea.sflag [#allocation6], 1
    %891 = vsyncpa %s890, 1
    %892 = vsyncpa [#allocation4], 1
    %s893 = scalar_lea.sflag [#allocation4], 1
    %894 = vsyncpa %s893, 1

</llo_original>
